<compile_context>
chip_gen: v7x
topology: tpu7x:2x2x1
jax: 0.10.0
libtpu: 0.0.40
codegen_flags: <defaults>
</compile_context>

<pallas_src>
import jax
import jax.numpy as jnp
from jax.experimental import pallas as pl
from jax.experimental.pallas import tpu as pltpu

HIDDEN = 50
H_PAD = 64   # hidden padded to 64 for clean lane handling (padded units contribute 0)
OUT = 1


def _round_up(n, m):
    return ((n + m - 1) // m) * m


def _mlp_kernel(scal_ref, x_ref, w1_ref, b1_ref, w2_ref, o_ref):
    # scal_ref: SMEM (2,) f32 = [prelu_alpha, b2]
    x = x_ref[...]                                                     # (TB, F)

    # Layer 1 on the MXU (f32 accumulate); bias + PReLU on the VPU in f32.
    h = jnp.dot(x, w1_ref[...], preferred_element_type=jnp.float32) + b1_ref[...]
    a = scal_ref[0]
    h = jnp.where(h >= 0, h, a * h)                                    # (TB, 64) f32

    # Layer 2 on the (otherwise idle) MXU, contracting the hidden axis of both
    # operands: (1,64) . (TB,64)^T -> (1, TB).  The result is lane-dense along the
    # batch so the store and output DMA are contiguous (no vst.msk columns).
    o = jax.lax.dot_general(
        w2_ref[...], h,
        dimension_numbers=(((1,), (1,)), ((), ())),
        preferred_element_type=jnp.float32)                            # (1, TB)
    o = o + scal_ref[1]
    o_ref[...] = o[None].astype(o_ref.dtype)                           # (1, 1, TB)


def prepare_params(w1, b1, alpha, w2, b2, *, stream_dtype=None):
    """One-time padding/casting of parameters (hoisted out of the per-call path).

    w1: (F, 50), b1: (50,), alpha: scalar, w2: (50, 1), b2: (1,).
    Hidden dim is zero-padded 50 -> 64: padded columns give h = 0, PReLU(0) = 0,
    and multiply zero w2 rows, so the output is bit-identical.
    """
    hp = H_PAD - HIDDEN
    w1p = jnp.pad(jnp.asarray(w1, jnp.float32), ((0, 0), (0, hp)))          # (F, 64)
    if stream_dtype is not None:
        w1p = w1p.astype(stream_dtype)      # bf16 streaming; accumulate stays f32
    b1p = jnp.pad(jnp.asarray(b1, jnp.float32), (0, hp)).reshape(1, H_PAD)  # (1, 64)
    w2p = jnp.pad(jnp.asarray(w2, jnp.float32).reshape(HIDDEN),
                  (0, hp)).reshape(1, H_PAD)                                # (1, 64)
    scal = jnp.stack([jnp.asarray(alpha, jnp.float32).reshape(()),
                      jnp.asarray(b2, jnp.float32).reshape(())])            # (2,)
    return w1p, b1p, w2p, scal


def _derive_block_rows(num_features, bytes_per_elem, vmem_budget_bytes):
    """Largest batch-tile that keeps the double-buffered working set in budget."""
    # Resident weights (double-buffered by the pipeline even with constant maps).
    resident = 2 * (num_features * H_PAD * bytes_per_elem + 2 * H_PAD * 4)
    # Per batch-row VMEM cost:
    #   x tile:            2 buffers * F * bytes_per_elem
    #   h intermediates:   ~3 copies of 64 f32 (matmul acc, bias/PReLU, temps)
    #   output tile:       2 buffers * 8 sublane-padded f32
    per_row = 2 * num_features * bytes_per_elem + 3 * H_PAD * 4 + 2 * 8 * 4
    avail = vmem_budget_bytes - resident - (4 << 20)     # slack for compiler scratch
    tb = max(8, avail // per_row)
    tb = min(tb, 32768)                                   # keep intermediates bounded
    return max(8, (tb // 8) * 8)


def pure_linear_forward(x, params, *,
                        block_rows=None,
                        vmem_budget_bytes=40 * 1024 * 1024,
                        vmem_limit_bytes=56 * 1024 * 1024):
    """x: (B, F); params = prepare_params(...). Returns (B, 1) f32."""
    w1p, b1p, w2p, scal = params
    B, F = x.shape
    assert w1p.shape == (F, H_PAD)

    # Stream x in whatever precision the weights were prepared with (bf16 opt-in).
    if x.dtype != w1p.dtype:
        x = x.astype(w1p.dtype)
    bpe = jnp.dtype(x.dtype).itemsize

    # --- Batch tiling -------------------------------------------------------
    if block_rows is not None:
        tb = max(8, (int(block_rows) // 8) * 8)
    else:
        tb = _derive_block_rows(F, bpe, vmem_budget_bytes)
        tb_full = _round_up(B, 8)
        if tb >= tb_full:
            # Whole batch fits one tile: split into two so both TensorCores on
            # v7x (megacore) get work, unless the batch is tiny.
            tb = _round_up(-(-B // 2), 8) if B >= 16 else tb_full
    n_tiles = pl.cdiv(B, tb)
    # NOTE: B need not be a multiple of tb -- the last block is partial; Pallas
    # clamps the x DMA to valid rows and the extra output lanes are sliced off.

    out = pl.pallas_call(
        _mlp_kernel,
        out_shape=jax.ShapeDtypeStruct((n_tiles, 1, tb), jnp.float32),
        grid=(n_tiles,),
        in_specs=[
            pl.BlockSpec(memory_space=pltpu.MemorySpace.SMEM),      # [alpha, b2]
            pl.BlockSpec((tb, F), lambda i: (i, 0)),                # x: streamed per tile
            pl.BlockSpec((F, H_PAD), lambda i: (0, 0)),             # w1: resident in VMEM
            pl.BlockSpec((1, H_PAD), lambda i: (0, 0)),             # b1: resident
            pl.BlockSpec((1, H_PAD), lambda i: (0, 0)),             # w2 row: resident
            # TODO(synk): add pipeline_mode=pl.Buffered(3) on the x spec only if
            # xprof still shows exposed DMA after the tile-size increase.
        ],
        out_specs=pl.BlockSpec((1, 1, tb), lambda i: (i, 0, 0)),    # lane-dense row
        compiler_params=pltpu.CompilerParams(
            dimension_semantics=("parallel",),     # batch tiles shard across v7x's 2 TCs
            vmem_limit_bytes=vmem_limit_bytes,
        ),
    )(scal, x, w1p, b1p, w2p)

    # (n_tiles, 1, tb) -> (B, 1); drops the padded tail of the last partial tile.
    return out.reshape(n_tiles * tb)[:B].reshape(B, OUT)


def init_params(key, num_features):
    """Deterministic parameter init matching PyTorch module shapes/semantics."""
    k1, k2, k3, k4 = jax.random.split(key, 4)
    bound1 = 1.0 / jnp.sqrt(num_features)
    w1 = jax.random.uniform(k1, (num_features, HIDDEN), jnp.float32, -bound1, bound1)
    b1 = jax.random.uniform(k2, (HIDDEN,), jnp.float32, -bound1, bound1)
    bound2 = 1.0 / jnp.sqrt(HIDDEN)
    w2 = jax.random.uniform(k3, (HIDDEN, OUT), jnp.float32, -bound2, bound2)
    b2 = jax.random.uniform(k4, (OUT,), jnp.float32, -bound2, bound2)
    alpha = jnp.float32(0.25)   # nn.PReLU default init (single shared parameter)
    return w1, b1, alpha, w2, b2


def reference_forward(x, w1, b1, alpha, w2, b2):
    h = x @ w1 + b1
    h = jnp.where(h >= 0, h, alpha * h)
    return h @ w2 + b2


if __name__ == "__main__":
    key = jax.random.PRNGKey(0)
    kx, kp, kx2 = jax.random.split(key, 3)

    F = 32
    w1, b1, alpha, w2, b2 = init_params(kp, F)
    params = prepare_params(w1, b1, alpha, w2, b2)   # pad/cast once, reuse

    # Case 1: tiny single-tile batch.
    x_small = jax.random.normal(kx, (8, F), jnp.float32)
    out_small = jax.block_until_ready(pure_linear_forward(x_small, params))
    ref_small = reference_forward(x_small, w1, b1, alpha, w2, b2)
    assert out_small.shape == (8, OUT), out_small.shape
    assert jnp.allclose(out_small, ref_small, atol=1e-4, rtol=1e-4)

    # Case 2: ragged batch -> 2 tiles (megacore split), partial last block.
    x_big = jax.random.normal(kx2, (300, F), jnp.float32)
    out_big = jax.block_until_ready(pure_linear_forward(x_big, params))
    ref_big = reference_forward(x_big, w1, b1, alpha, w2, b2)
    assert out_big.shape == (300, OUT), out_big.shape
    assert jnp.allclose(out_big, ref_big, atol=1e-4, rtol=1e-4)

    # Case 3: forced small tiles -> many grid steps + ragged tail.
    out_multi = jax.block_until_ready(
        pure_linear_forward(x_big, params, block_rows=64))
    assert out_multi.shape == (300, OUT), out_multi.shape
    assert jnp.allclose(out_multi, ref_big, atol=1e-4, rtol=1e-4)

    print("KERNEL_OK")
</pallas_src>

<mosaic_0001>
module attributes {stable_mosaic.version = 11 : i64} {
  func.func @_mlp_kernel(%arg0: i32, %arg1: memref<2xf32, #tpu.memory_space<smem>>, %arg2: memref<8x32xf32, #tpu.memory_space<vmem>>, %arg3: memref<32x64xf32, #tpu.memory_space<vmem>>, %arg4: memref<1x64xf32, #tpu.memory_space<vmem>>, %arg5: memref<1x64xf32, #tpu.memory_space<vmem>>, %arg6: memref<1x1x8xf32, #tpu.memory_space<vmem>>) attributes {dimension_semantics = [#tpu.dimension_semantics<parallel>], iteration_bounds = array<i64: 1>, scalar_prefetch = 0 : i64, scratch_operands = 0 : i64, tpu.core_type = #tpu.core_type<tc>, window_params = [{transform_indices = @transform_0, window_bounds = array<i64: 2>}, {transform_indices = @transform_1, window_bounds = array<i64: 8, 32>}, {pipeline_mode = #tpu.pipeline_mode<synchronous>, transform_indices = @transform_2, window_bounds = array<i64: 32, 64>}, {pipeline_mode = #tpu.pipeline_mode<synchronous>, transform_indices = @transform_3, window_bounds = array<i64: 1, 64>}, {pipeline_mode = #tpu.pipeline_mode<synchronous>, transform_indices = @transform_4, window_bounds = array<i64: 1, 64>}, {transform_indices = @transform_5, window_bounds = array<i64: 1, 1, 8>}]} {
    %c0 = arith.constant 0 : index
    %c0_0 = arith.constant 0 : index
    %0 = vector.load %arg2[%c0, %c0_0] : memref<8x32xf32, #tpu.memory_space<vmem>>, vector<8x32xf32>
    %c0_1 = arith.constant 0 : index
    %c0_2 = arith.constant 0 : index
    %1 = vector.load %arg3[%c0_1, %c0_2] : memref<32x64xf32, #tpu.memory_space<vmem>>, vector<32x64xf32>
    %cst = arith.constant dense<0.000000e+00> : vector<8x64xf32>
    %2 = tpu.matmul %0, %1, %cst {dimension_numbers = #tpu.dot_dimension_numbers<[1], [0], [0], [1], [0, 0, 1, 1], [], []>} : vector<8x32xf32>, vector<32x64xf32>, vector<8x64xf32> -> vector<8x64xf32>
    %c0_3 = arith.constant 0 : index
    %c0_4 = arith.constant 0 : index
    %3 = vector.load %arg4[%c0_3, %c0_4] : memref<1x64xf32, #tpu.memory_space<vmem>>, vector<1x64xf32>
    %4 = vector.broadcast %3 : vector<1x64xf32> to vector<8x64xf32>
    %5 = arith.addf %2, %4 : vector<8x64xf32>
    %c0_5 = arith.constant 0 : index
    %6 = memref.load %arg1[%c0_5] : memref<2xf32, #tpu.memory_space<smem>>
    %cst_6 = arith.constant 0.000000e+00 : f32
    %7 = vector.broadcast %cst_6 : f32 to vector<8x64xf32>
    %8 = arith.cmpf oge, %5, %7 : vector<8x64xf32>
    %9 = vector.broadcast %6 : f32 to vector<8x64xf32>
    %10 = arith.mulf %9, %5 : vector<8x64xf32>
    %11 = arith.select %8, %5, %10 : vector<8x64xi1>, vector<8x64xf32>
    %c0_7 = arith.constant 0 : index
    %c0_8 = arith.constant 0 : index
    %12 = vector.load %arg5[%c0_7, %c0_8] : memref<1x64xf32, #tpu.memory_space<vmem>>, vector<1x64xf32>
    %cst_9 = arith.constant dense<0.000000e+00> : vector<1x8xf32>
    %13 = tpu.matmul %12, %11, %cst_9 {dimension_numbers = #tpu.dot_dimension_numbers<[1], [1], [0], [0], [0, 0, 1, 0], [], []>} : vector<1x64xf32>, vector<8x64xf32>, vector<1x8xf32> -> vector<1x8xf32>
    %c1 = arith.constant 1 : index
    %14 = memref.load %arg1[%c1] : memref<2xf32, #tpu.memory_space<smem>>
    %15 = vector.broadcast %14 : f32 to vector<1x8xf32>
    %16 = arith.addf %13, %15 : vector<1x8xf32>
    %17 = vector.shape_cast %16 : vector<1x8xf32> to vector<1x1x8xf32>
    %c0_10 = arith.constant 0 : index
    %c0_11 = arith.constant 0 : index
    %c0_12 = arith.constant 0 : index
    %18 = vector.load %arg6[%c0_10, %c0_11, %c0_12] : memref<1x1x8xf32, #tpu.memory_space<vmem>>, vector<1x1x8xf32>
    tpu.vector_store %arg6[%c0_10, %c0_11, %c0_12], %17 {strides = array<i32>} : memref<1x1x8xf32, #tpu.memory_space<vmem>>, vector<1x1x8xf32>,
    return
  }
  func.func @transform_0(%arg0: i32) -> i32 {
    %c0_i32 = arith.constant 0 : i32
    %c0_i32_0 = arith.constant 0 : i32
    return %c0_i32 : i32
  }
  func.func @transform_1(%arg0: i32) -> (i32, i32) {
    %c0_i32 = arith.constant 0 : i32
    %c0_i32_0 = arith.constant 0 : i32
    return %arg0, %c0_i32 : i32, i32
  }
  func.func @transform_2(%arg0: i32) -> (i32, i32) {
    %c0_i32 = arith.constant 0 : i32
    %c0_i32_0 = arith.constant 0 : i32
    %c0_i32_1 = arith.constant 0 : i32
    return %c0_i32, %c0_i32_0 : i32, i32
  }
  func.func @transform_3(%arg0: i32) -> (i32, i32) {
    %c0_i32 = arith.constant 0 : i32
    %c0_i32_0 = arith.constant 0 : i32
    %c0_i32_1 = arith.constant 0 : i32
    return %c0_i32, %c0_i32_0 : i32, i32
  }
  func.func @transform_4(%arg0: i32) -> (i32, i32) {
    %c0_i32 = arith.constant 0 : i32
    %c0_i32_0 = arith.constant 0 : i32
    %c0_i32_1 = arith.constant 0 : i32
    return %c0_i32, %c0_i32_0 : i32, i32
  }
  func.func @transform_5(%arg0: i32) -> (i32, i32, i32) {
    %c0_i32 = arith.constant 0 : i32
    %c0_i32_0 = arith.constant 0 : i32
    %c0_i32_1 = arith.constant 0 : i32
    return %arg0, %c0_i32, %c0_i32_0 : i32, i32, i32
  }
}

</mosaic_0001>

<llo_original>
// kernel: tpu_custom_call.1
$region0: #{tpu_custom_call.1}
  #allocation0 [shape = 'u32[]', space=smem, size = 0x4, offset = 0x4, fixed_abs, tag = 'smem constant byte address 0x4 - core index']
  #allocation1 [shape = 'u32[144,128]{1,0:T(1,128)}', space=vmem, size = 0x12000, scoped, tag = 'internal scratch']
  %s0 = inlined_call_operand.hbm [shape: f32[2], index: 0, kind: input, shape index: {}]
  %s1 = inlined_call_operand.hbm [shape: f32[8,32], index: 1, kind: input, shape index: {}]
  %s2 = inlined_call_operand.hbm [shape: f32[32,64], index: 2, kind: input, shape index: {}]
  %s3 = inlined_call_operand.vmem [shape: f32[1,64], index: 3, kind: input, shape index: {}]
  %s4 = inlined_call_operand.vmem [shape: f32[1,64], index: 4, kind: input, shape index: {}]
  %s5 = inlined_call_operand.hbm [shape: f32[1,1,8], index: 5, kind: output, shape index: {}]
  %s6 = sld [smem:[#allocation0]]
  $region42: #{tpu_custom_call.1} parent=0
    _
  %s8 = ssub.s32 1, %s6
  %s9 = scalar_select 0, %s8, %s6
  $region1: #{tpu_custom_call.1} parent=0
    #allocation2 [shape = 'u8[512]{0}', space=smem, size = 0x200, scoped, tag = 'input window, operand 0, single buffered']
    #allocation3 [shape = 's32[1]{0}', space=sflag, size = 0x4, scoped, tag = 'scoped memory for tpu_custom_call.1']
    #allocation4 [shape = 's32[1]{0}', space=sflag, size = 0x4, scoped, tag = 'scoped memory for tpu_custom_call.1']
    #allocation5 [shape = 's32[1]{0}', space=sflag, size = 0x4, scoped, tag = 'scoped memory for tpu_custom_call.1']
    #allocation6 [shape = 'u8[4096]{0}', space=vmem, size = 0x1000, scoped, tag = 'input window, operand 1, single buffered']
    #allocation7 [shape = 'u8[16384]{0}', space=vmem, size = 0x4000, scoped, tag = 'input window, operand 2, single buffered']
    #allocation8 [shape = 's32[1]{0}', space=sflag, size = 0x4, scoped, tag = 'scoped memory for tpu_custom_call.1']
    #allocation9 [shape = 'u8[512]{0}', space=vmem, size = 0x400, scoped, tag = 'output window, operand 0, single buffered']
    %10 = vsyncpa [#allocation5], 0
    %11 = vsyncpa [#allocation3], 0
    %12 = vsyncpa [#allocation8], 0
    %13 = vsyncpa [#allocation4], 0
    // Predicated region
    $region2: #{tpu_custom_call.1} parent=1 // pred_check
      _
    $region3: #{tpu_custom_call.1} parent=1 // pred_check_branch
      %15 = sbr.rel (0) target = $region5
    $region4: #{tpu_custom_call.1} parent=1 // pred_region
      %s17 = ssub.s32 16, 16
      %18 = vsyncadd [#allocation5], %s17
      %21 = dma.hbm_to_smem %s0, 16, [#allocation2], [#allocation5]
    $region5: #{tpu_custom_call.1} parent=1 // pred_fallthru
      _
    // Predicated region
    $region6: #{tpu_custom_call.1} parent=1 // pred_check
      _
    $region7: #{tpu_custom_call.1} parent=1 // pred_check_branch
      %23 = sbr.rel (0) target = $region9
    $region8: #{tpu_custom_call.1} parent=1 // pred_region
      %s25 = ssub.s32 128, 128
      %26 = vsyncadd [#allocation3], %s25
      %s28 = sshll.u32 [#allocation6], 4
      %s29 = int_to_ptr.vmem [resolvable:$true] %s28
      %31 = dma.hbm_to_vmem [thread:$0]  %s1, 128, %s29, [#allocation3]
    $region9: #{tpu_custom_call.1} parent=1 // pred_fallthru
      _
    // Predicated region
    $region10: #{tpu_custom_call.1} parent=1 // pred_check
      _
    $region11: #{tpu_custom_call.1} parent=1 // pred_check_branch
      %33 = sbr.rel (0) target = $region13
    $region12: #{tpu_custom_call.1} parent=1 // pred_region
      %s35 = ssub.s32 512, 512
      %36 = vsyncadd [#allocation8], %s35
      %s37 = sshll.u32 [#allocation7], 4
      %s38 = int_to_ptr.vmem [resolvable:$true] %s37
      %43 = dma.hbm_to_vmem [thread:$0]  %s2, 512, %s38, [#allocation8], 128, 128, 8
    $region13: #{tpu_custom_call.1} parent=1 // pred_fallthru
      _
    // Predicated region
    $region14: #{tpu_custom_call.1} parent=1 // pred_check
      _
    $region15: #{tpu_custom_call.1} parent=1 // pred_check_branch
      %45 = sbr.rel (0) target = $region17
    $region16: #{tpu_custom_call.1} parent=1 // pred_region
      _
    $region17: #{tpu_custom_call.1} parent=1 // pred_fallthru
      _
    // Predicated region
    $region18: #{tpu_custom_call.1} parent=1 // pred_check
      _
    $region19: #{tpu_custom_call.1} parent=1 // pred_check_branch
      %47 = sbr.rel (0) target = $region21
    $region20: #{tpu_custom_call.1} parent=1 // pred_region
      _
    $region21: #{tpu_custom_call.1} parent=1 // pred_fallthru
      _
    // Predicated region
    $region22: #{tpu_custom_call.1} parent=1 // pred_check
      _
    $region23: #{tpu_custom_call.1} parent=1 // pred_check_branch
      %49 = sbr.rel (0) target = $region25
    $region24: #{tpu_custom_call.1} parent=1 // pred_region
      %50 = dma.done [#allocation5], 16
    $region25: #{tpu_custom_call.1} parent=1 // pred_fallthru
      _
    // Predicated region
    $region26: #{tpu_custom_call.1} parent=1 // pred_check
      _
    $region27: #{tpu_custom_call.1} parent=1 // pred_check_branch
      %52 = sbr.rel (0) target = $region29
    $region28: #{tpu_custom_call.1} parent=1 // pred_region
      %53 = dma.done [#allocation3], 128
    $region29: #{tpu_custom_call.1} parent=1 // pred_fallthru
      _
    // Predicated region
    $region30: #{tpu_custom_call.1} parent=1 // pred_check
      _
    $region31: #{tpu_custom_call.1} parent=1 // pred_check_branch
      %55 = sbr.rel (0) target = $region33
    $region32: #{tpu_custom_call.1} parent=1 // pred_region
      %56 = dma.done [#allocation8], 512
    $region33: #{tpu_custom_call.1} parent=1 // pred_fallthru
      _
    %57 = sfence
    %v58 = vld [vmem:[#allocation6] sm:$0xff]
    %v59 = vld [vmem:[#allocation7] sm:$0xff]
    %v60 = vld [vmem:[#allocation7 + $0x8] sm:$0xff]
    %v61 = vld [vmem:[#allocation7 + $0x10] sm:$0xff]
    %v62 = vld [vmem:[#allocation7 + $0x18] sm:$0xff]
    %v63 = vld [vmem:[%s3] sm:$0x1]
    %v65 = vlaneseq
    %v66 = vshrl.u32 %v65, 7
    %v67 = vsub.s32 0, %v66
    %v68 = vrot.slane %v63, %v67
    %vm70 = vcmask 261120
    %v72 = vsel %vm70, %v58, 0
    %74 = vmatprep.subr.mxu0 0.0
    %75 = vmatpush1.msra.mxu0 %v59
    %76 = vmatprep.subr.mxu0 0.0
    %77 = vmatpush1.msra.mxu0 %v60
    %78 = vmatprep.subr.mxu0 0.0
    %79 = vmatpush1.msra.mxu0 %v61
    %80 = vmatprep.subr.mxu0 0.0
    %81 = vmatpush1.msra.mxu0 %v62
    %82 = vmatprep.subr.mxu0 0.0
    %83 = vmatpush1.msra.mxu0 0.0
    %84 = vmatprep.subr.mxu0 0.0
    %85 = vmatpush1.msra.mxu0 0.0
    %86 = vmatprep.subr.mxu0 0.0
    %87 = vmatpush1.msra.mxu0 0.0
    %88 = vmatprep.subr.mxu0 0.0
    %89 = vmatpush1.msra.mxu0 0.0
    %90 = vmatprep.subr.mxu0 0.0
    %91 = vmatpush1.msra.mxu0 0.0
    %92 = vmatprep.subr.mxu0 0.0
    %93 = vmatpush1.msra.mxu0 0.0
    %94 = vmatprep.subr.mxu0 0.0
    %95 = vmatpush1.msra.mxu0 0.0
    %96 = vmatprep.subr.mxu0 0.0
    %97 = vmatpush1.msra.mxu0 0.0
    %98 = vmatprep.subr.mxu0 0.0
    %99 = vmatpush1.msra.mxu0 0.0
    %100 = vmatprep.subr.mxu0 0.0
    %101 = vmatpush1.msra.mxu0 0.0
    %102 = vmatprep.subr.mxu0 0.0
    %103 = vmatpush1.msra.mxu0 0.0
    %104 = vmatprep.subr.mxu0 0.0
    %105 = vmatpush1.msra.mxu0 0.0
    %106 = vmatprep.subr.mxu0 0.0
    %107 = vmatpush1.msra.mxu0 0.0
    %108 = vmatprep.subr.mxu0 0.0
    %109 = vmatpush1.msra.mxu0 0.0
    %110 = vmatprep.subr.mxu0 0.0
    %111 = vmatpush1.msra.mxu0 0.0
    %112 = vmatprep.subr.mxu0 0.0
    %113 = vmatpush1.msra.mxu0 0.0
    %114 = vmatprep.subr.mxu0 0.0
    %115 = vmatpush1.msra.mxu0 0.0
    %116 = vmatprep.subr.mxu0 0.0
    %117 = vmatpush1.msra.mxu0 0.0
    %118 = vmatprep.subr.mxu0 0.0
    %119 = vmatpush1.msra.mxu0 0.0
    %120 = vmatprep.subr.mxu0 0.0
    %121 = vmatpush1.msra.mxu0 0.0
    %122 = vmatprep.subr.mxu0 0.0
    %123 = vmatpush1.msra.mxu0 0.0
    %124 = vmatprep.subr.mxu0 0.0
    %125 = vmatpush1.msra.mxu0 0.0
    %126 = vmatprep.subr.mxu0 0.0
    %127 = vmatpush1.msra.mxu0 0.0
    %128 = vmatprep.subr.mxu0 0.0
    %129 = vmatpush1.msra.mxu0 0.0
    %130 = vmatprep.subr.mxu0 0.0
    %131 = vmatpush1.msra.mxu0 0.0
    %132 = vmatprep.subr.mxu0 0.0
    %133 = vmatpush1.msra.mxu0 0.0
    %134 = vmatprep.subr.mxu0 0.0
    %135 = vmatpush1.msra.mxu0 0.0
    %136 = vmatprep.subr.mxu0 0.0
    %137 = vmatpush1.msra.mxu0 0.0
    %138 = vmatprep.mubr.f32.mxu0 0.0
    %139 = vmatmul.mubr.f32.gmra.mrb[0].mxu0 %v72
    %v140 = vpop.f32.mrb[0].mxu0
    %v141 = vadd.f32 %v68, %v140
    %v142 = vpop.f32.mrb[0].mxu0
    %143 = vdwg.mxu0
    %s144 = sld [smem:[#allocation2]]
    %vm145 = vcmp.ge.f32.partialorder %v141, 0.0
    %v146 = vstv %s144
    %v147 = vmul.f32 %v146, %v141
    %v148 = vsel %vm145, %v141, %v147
    %v149 = vld [vmem:[%s4] sm:$0x1]
    %s150 = sld [smem:[#allocation2 + $0x1]]
    %v151 = vstv %s150
    %vm152 = vcmask 523264
    %v154 = vsel %vm152, %v149, 0
    %v157 = vsel %vm152, %v148, 0
    %159 = vmatprep.subr.mxu0 0.0
    %160 = vmatpush1.xpose.msra.mxu0 %v157
    %161 = vmatprep.subr.mxu0 0.0
    %162 = vmatpush1.xpose.msra.mxu0 0.0
    %163 = vmatprep.subr.mxu0 0.0
    %164 = vmatpush1.xpose.msra.mxu0 0.0
    %165 = vmatprep.subr.mxu0 0.0
    %166 = vmatpush1.xpose.msra.mxu0 0.0
    %167 = vmatprep.subr.mxu0 0.0
    %168 = vmatpush1.xpose.msra.mxu0 0.0
    %169 = vmatprep.subr.mxu0 0.0
    %170 = vmatpush1.xpose.msra.mxu0 0.0
    %171 = vmatprep.subr.mxu0 0.0
    %172 = vmatpush1.xpose.msra.mxu0 0.0
    %173 = vmatprep.subr.mxu0 0.0
    %174 = vmatpush1.xpose.msra.mxu0 0.0
    %175 = vmatprep.subr.mxu0 0.0
    %176 = vmatpush1.xpose.msra.mxu0 0.0
    %177 = vmatprep.subr.mxu0 0.0
    %178 = vmatpush1.xpose.msra.mxu0 0.0
    %179 = vmatprep.subr.mxu0 0.0
    %180 = vmatpush1.xpose.msra.mxu0 0.0
    %181 = vmatprep.subr.mxu0 0.0
    %182 = vmatpush1.xpose.msra.mxu0 0.0
    %183 = vmatprep.subr.mxu0 0.0
    %184 = vmatpush1.xpose.msra.mxu0 0.0
    %185 = vmatprep.subr.mxu0 0.0
    %186 = vmatpush1.xpose.msra.mxu0 0.0
    %187 = vmatprep.subr.mxu0 0.0
    %188 = vmatpush1.xpose.msra.mxu0 0.0
    %189 = vmatprep.subr.mxu0 0.0
    %190 = vmatpush1.xpose.msra.mxu0 0.0
    %191 = vmatprep.subr.mxu0 0.0
    %192 = vmatpush1.xpose.msra.mxu0 0.0
    %193 = vmatprep.subr.mxu0 0.0
    %194 = vmatpush1.xpose.msra.mxu0 0.0
    %195 = vmatprep.subr.mxu0 0.0
    %196 = vmatpush1.xpose.msra.mxu0 0.0
    %197 = vmatprep.subr.mxu0 0.0
    %198 = vmatpush1.xpose.msra.mxu0 0.0
    %199 = vmatprep.subr.mxu0 0.0
    %200 = vmatpush1.xpose.msra.mxu0 0.0
    %201 = vmatprep.subr.mxu0 0.0
    %202 = vmatpush1.xpose.msra.mxu0 0.0
    %203 = vmatprep.subr.mxu0 0.0
    %204 = vmatpush1.xpose.msra.mxu0 0.0
    %205 = vmatprep.subr.mxu0 0.0
    %206 = vmatpush1.xpose.msra.mxu0 0.0
    %207 = vmatprep.subr.mxu0 0.0
    %208 = vmatpush1.xpose.msra.mxu0 0.0
    %209 = vmatprep.subr.mxu0 0.0
    %210 = vmatpush1.xpose.msra.mxu0 0.0
    %211 = vmatprep.subr.mxu0 0.0
    %212 = vmatpush1.xpose.msra.mxu0 0.0
    %213 = vmatprep.subr.mxu0 0.0
    %214 = vmatpush1.xpose.msra.mxu0 0.0
    %215 = vmatprep.subr.mxu0 0.0
    %216 = vmatpush1.xpose.msra.mxu0 0.0
    %217 = vmatprep.subr.mxu0 0.0
    %218 = vmatpush1.xpose.msra.mxu0 0.0
    %219 = vmatprep.subr.mxu0 0.0
    %220 = vmatpush1.xpose.msra.mxu0 0.0
    %221 = vmatprep.subr.mxu0 0.0
    %222 = vmatpush1.xpose.msra.mxu0 0.0
    %223 = vmatprep.mubr.f32.mxu0 0.0
    %224 = vmatmul.mubr.f32.gmra.mrb[0].mxu0 %v154
    %v225 = vpop.f32.mrb[0].mxu0
    %v226 = vadd.f32 %v151, %v225
    %v227 = vpop.f32.mrb[0].mxu0
    %228 = vdwg.mxu0
    %vm229 = vcmask 57344
    %230 = vst.msk [vmem:[#allocation9] sm:$0x1] %vm229, %v226
    // Predicated region
    $region34: #{tpu_custom_call.1} parent=1 // pred_check
      _
    $region35: #{tpu_custom_call.1} parent=1 // pred_check_branch
      %232 = sbr.rel (0) target = $region37
    $region36: #{tpu_custom_call.1} parent=1 // pred_region
      %s234 = ssub.s32 16, 16
      %235 = vsyncadd [#allocation4], %s234
      %s237 = sshll.u32 [#allocation9], 4
      %s238 = int_to_ptr.vmem [resolvable:$true] %s237
      %240 = dma.vmem_to_hbm [thread:$0]  %s238, 16, %s5, [#allocation4]
    $region37: #{tpu_custom_call.1} parent=1 // pred_fallthru
      _
    // Predicated region
    $region38: #{tpu_custom_call.1} parent=1 // pred_check
      _
    $region39: #{tpu_custom_call.1} parent=1 // pred_check_branch
      %242 = sbr.rel (0) target = $region41
    $region40: #{tpu_custom_call.1} parent=1 // pred_region
      %243 = dma.done [#allocation4], 16
    $region41: #{tpu_custom_call.1} parent=1 // pred_fallthru
      _
    %244 = vsyncpa [#allocation3], 1
    %245 = vsyncpa [#allocation8], 1
    %246 = vsyncpa [#allocation4], 1
    %247 = vsyncpa [#allocation5], 1

</llo_original>
